<compile_context>
chip_gen: v7x
topology: tpu7x:2x2x1
jax: 0.10.0
libtpu: 0.0.40
codegen_flags: <defaults>
</compile_context>

<pallas_src>
import functools
import math

import jax
import jax.numpy as jnp
import numpy as np
from jax.experimental import pallas as pl
from jax.experimental.pallas import tpu as pltpu

LN_EPS = 1e-5


def _round_up(n, m):
    return ((n + m - 1) // m) * m


def _ln_padded(h, g, b, true_dim):
    """LayerNorm over a zero-padded lane axis.

    The padded columns of `h` are exactly 0 (weights/biases are zero-padded),
    so sums over the padded axis equal sums over the true feature columns and
    dividing by the true dim gives the exact unpadded statistics.
    Single-pass E[x^2]-E[x]^2 in f32 (activations are LN/ReLU-scaled, so this
    is well within the 6e-2 tolerance).
    """
    inv_n = 1.0 / float(true_dim)
    mu = jnp.sum(h, axis=-1, keepdims=True) * inv_n
    ms = jnp.sum(h * h, axis=-1, keepdims=True) * inv_n
    var = jnp.maximum(ms - mu * mu, 0.0)
    return (h - mu) * jax.lax.rsqrt(var + LN_EPS) * g + b


def _mm(a, w_ref):
    # bf16 MXU operands, f32 accumulation.
    return jnp.dot(a.astype(jnp.bfloat16), w_ref[...],
                   preferred_element_type=jnp.float32)


def embedding_projector_kernel(
    x_ref,      # (TB, d0)             f32   true feature width (Mosaic pads lanes)
    w1r_ref,    # (d0, d0p + Ep)       bf16  [w1 | wr]
    w2_ref,     # (d0p, d1p)           bf16
    w3_ref,     # (d1p, Ep)            bf16
    wvo_ref,    # (Ep, Ep)             bf16  wv @ wo (fused attention tail)
    vec_ref,    # (1, V)               f32   packed biases / LN gammas / betas
    o_ref,      # (TB, Ep)             bf16
    *, d0p, d1p, ep, d0, d1, e,
):
    # ---- unpack the packed parameter slab (static, lane-aligned slices) ----
    off = 0

    def take(width):
        nonlocal off
        seg = vec_ref[:, off:off + width]          # (1, width) f32
        off += width
        return seg

    b1r = take(d0p + ep)
    g1, be1 = take(d0p), take(d0p)
    b2, g2, be2 = take(d1p), take(d1p), take(d1p)
    b3, g3, be3 = take(ep), take(ep), take(ep)
    bvo = take(ep)
    gf, bf = take(ep), take(ep)

    # ---- fused first matmul: x @ [w1 | wr]  (cast to bf16 in-register) ----
    h1r = _mm(x_ref[...], w1r_ref) + b1r
    h = h1r[:, :d0p]                 # first projector layer pre-activation
    residual = h1r[:, d0p:]          # residual_proj(x)

    # block 1: LayerNorm -> ReLU   (Dropout is identity in eval)
    h = jnp.maximum(_ln_padded(h, g1, be1, d0), 0.0)
    # block 2
    h = _mm(h, w2_ref) + b2
    h = jnp.maximum(_ln_padded(h, g2, be2, d1), 0.0)
    # block 3
    h = _mm(h, w3_ref) + b3
    h = jnp.maximum(_ln_padded(h, g3, be3, e), 0.0)

    # residual add
    h = h + residual

    # length-1-sequence self-attention == out_proj(v_proj(h)) == h @ (wv@wo) + bvo
    h = _mm(h, wvo_ref) + bvo

    # final LayerNorm + tanh
    h = _ln_padded(h, gf, bf, e)
    o_ref[...] = jnp.tanh(h).astype(o_ref.dtype)


def prepare_projector_params(params):
    """One-time (model-load-time) weight preparation.

    Does the exact algebraic fusions, zero-pads feature dims to multiples of
    128 lanes, casts MXU operands to bf16 and packs every bias / LN vector into
    one lane-dense f32 slab.  Run this ONCE, not per forward call.
    """
    f32, bf16 = jnp.float32, jnp.bfloat16
    d0 = params["w1"].shape[0]
    d1 = params["w2"].shape[1]
    e = params["wr"].shape[1]
    d0p, d1p, ep = (_round_up(v, 128) for v in (d0, d1, e))

    def padw(a, r, c):
        a = jnp.asarray(a, f32)
        return jnp.pad(a, ((0, r - a.shape[0]), (0, c - a.shape[1])))

    def padv(a, c):
        a = jnp.asarray(a, f32).reshape(1, -1)
        return jnp.pad(a, ((0, 0), (0, c - a.shape[1])))

    # attention on a length-1 sequence collapses to a single matmul
    wvo = params["wv"] @ params["wo"]
    bvo = params["bv"].reshape(1, -1) @ params["wo"] + params["bo"].reshape(1, -1)
    # first projector layer and residual projection share the same input x
    w1r = jnp.concatenate([padw(params["w1"], d0, d0p),
                           padw(params["wr"], d0, ep)], axis=1)
    b1r = jnp.concatenate([padv(params["b1"], d0p), padv(params["br"], ep)], axis=1)

    # packed bias / LN-parameter slab (f32, lane-dense, 128-aligned segments)
    vec = jnp.concatenate([
        b1r,
        padv(params["g1"], d0p), padv(params["be1"], d0p),
        padv(params["b2"], d1p), padv(params["g2"], d1p), padv(params["be2"], d1p),
        padv(params["b3"], ep), padv(params["g3"], ep), padv(params["be3"], ep),
        padv(bvo, ep),
        padv(params["gf"], ep), padv(params["bf"], ep),
    ], axis=1)

    weights = dict(
        w1r=w1r.astype(bf16),                          # (d0, d0p+ep)
        w2=padw(params["w2"], d0p, d1p).astype(bf16),  # (d0p, d1p)
        w3=padw(params["w3"], d1p, ep).astype(bf16),   # (d1p, ep)
        wvo=padw(wvo, ep, ep).astype(bf16),            # (ep, ep)
        vec=vec,                                       # (1, V) f32
    )
    weights = jax.block_until_ready(weights)           # materialize once
    dims = dict(d0=d0, d1=d1, e=e, d0p=d0p, d1p=d1p, ep=ep)
    return weights, dims


def _vmem_capacity_bytes():
    try:
        return int(pltpu.get_tpu_info().vmem_capacity_bytes)
    except Exception:
        return 64 << 20   # conservative default (v7x per-TensorCore)


def advanced_embedding_projector(x, prepared, *, batch_tile=None):
    """x: [batch, input_dim] f32 -> [batch, embedding_dim] f32 (eval mode)."""
    weights, dims = prepared
    d0, d1, e = dims["d0"], dims["d1"], dims["e"]
    d0p, d1p, ep = dims["d0p"], dims["d1p"], dims["ep"]
    batch = x.shape[0]
    assert x.shape[1] == d0

    f32, bf16 = jnp.float32, jnp.bfloat16
    w1r, w2, w3, wvo, vec = (weights[k] for k in ("w1r", "w2", "w3", "wvo", "vec"))
    vlen = vec.shape[1]

    # ---- generation-aware VMEM budget (v5e/v6e: 128 MiB, v7x: 64 MiB) ----
    cap = _vmem_capacity_bytes()
    fit_target = int(cap * 0.6)
    limit_cap = int(cap * 0.75)
    if batch_tile is None:
        batch_tile = 2048 if cap >= (96 << 20) else 512

    # Pallas double-buffers every input, including constant-index_map weights,
    # so account 2x for the resident operands.
    weight_bytes = 2 * (2 * (w1r.size + w2.size + w3.size + wvo.size) + 4 * vlen)

    def _vmem_estimate(tb_):
        io = 2 * (tb_ * d0 * 4 + tb_ * ep * 2)        # double-buffered x(f32)/out(bf16)
        live = 8 * tb_ * max(d0p + ep, d1p) * 4       # f32 intermediates headroom
        return weight_bytes + io + live

    # ---- batch tile: multiple of 16 (bf16 sublanes), >=2 grid steps when able ----
    bp_min = _round_up(batch, 16)
    tb = _round_up(min(batch_tile, bp_min), 16)
    if bp_min <= tb and bp_min >= 32:
        # split so both v7x TensorCores get work and the pipeline has >1 step
        tb = _round_up((bp_min + 1) // 2, 16)
    while tb > 16 and _vmem_estimate(tb) > fit_target:
        tb = _round_up(tb // 2, 16)
    bp = _round_up(batch, tb)
    nb = bp // tb
    vmem_limit = int(min(max(_vmem_estimate(tb), 32 << 20), limit_cap))

    # x stays f32 at its true feature width -- no padded / recast HBM copy.
    xk = x.astype(f32)
    if bp != batch:
        xk = jnp.pad(xk, ((0, bp - batch), (0, 0)))

    kernel = functools.partial(
        embedding_projector_kernel,
        d0p=d0p, d1p=d1p, ep=ep, d0=d0, d1=d1, e=e)

    flops = 2 * bp * (d0 * (d0p + ep) + d0p * d1p + d1p * ep + ep * ep)
    bytes_accessed = (bp * (d0 * 4 + ep * 2)
                      + 2 * (w1r.size + w2.size + w3.size + wvo.size) + 4 * vlen)
    cost = pl.CostEstimate(flops=flops, transcendentals=2 * bp * ep,
                           bytes_accessed=bytes_accessed)

    const = lambda i: (0, 0)
    out = pl.pallas_call(
        kernel,
        out_shape=jax.ShapeDtypeStruct((bp, ep), bf16),
        grid=(nb,),
        in_specs=[
            pl.BlockSpec((tb, d0), lambda i: (i, 0)),      # x tile (pipelined)
            pl.BlockSpec((d0, d0p + ep), const),           # [w1|wr]   (resident)
            pl.BlockSpec((d0p, d1p), const),               # w2        (resident)
            pl.BlockSpec((d1p, ep), const),                # w3        (resident)
            pl.BlockSpec((ep, ep), const),                 # wv@wo     (resident)
            pl.BlockSpec((1, vlen), const),                # packed biases / LN
        ],
        out_specs=pl.BlockSpec((tb, ep), lambda i: (i, 0)),
        compiler_params=pltpu.CompilerParams(
            dimension_semantics=("parallel",),
            vmem_limit_bytes=vmem_limit),
        cost_estimate=cost,
    )(xk, w1r, w2, w3, wvo, vec)

    return out[:batch, :e].astype(f32)


def reference(x, params):
    """Pure-JAX f32 reference (mirrors the PyTorch module in eval mode)."""
    def ln(h, g, b):
        mu = jnp.mean(h, -1, keepdims=True)
        var = jnp.mean((h - mu) ** 2, -1, keepdims=True)
        return (h - mu) * jax.lax.rsqrt(var + LN_EPS) * g + b

    residual = x @ params["wr"] + params["br"]
    h = jnp.maximum(ln(x @ params["w1"] + params["b1"], params["g1"], params["be1"]), 0.0)
    h = jnp.maximum(ln(h @ params["w2"] + params["b2"], params["g2"], params["be2"]), 0.0)
    h = jnp.maximum(ln(h @ params["w3"] + params["b3"], params["g3"], params["be3"]), 0.0)
    h = h + residual
    v = h @ params["wv"] + params["bv"]
    h = v @ params["wo"] + params["bo"]
    return jnp.tanh(ln(h, params["gf"], params["bf"]))


def init_params(key, input_dim, embedding_dim):
    """Deterministic synthetic parameters (shapes/init match the PyTorch module)."""
    d0, d1, e = input_dim, input_dim * 2, embedding_dim
    ks = jax.random.split(key, 12)

    def lin(kw, kb, din, dout):
        s = 1.0 / math.sqrt(din)
        w = jax.random.uniform(kw, (din, dout), jnp.float32, -s, s)
        b = jax.random.uniform(kb, (dout,), jnp.float32, -s, s)
        return w, b

    w1, b1 = lin(ks[0], ks[1], d0, d0)
    w2, b2 = lin(ks[2], ks[3], d0, d1)
    w3, b3 = lin(ks[4], ks[5], d1, e)
    wr, br = lin(ks[6], ks[7], d0, e)
    wv, bv = lin(ks[8], ks[9], e, e)     # value-projection slice of in_proj_weight
    wo, bo = lin(ks[10], ks[11], e, e)   # attention out_proj

    ones = lambda d: jnp.ones((d,), jnp.float32)
    zeros = lambda d: jnp.zeros((d,), jnp.float32)
    return {
        "w1": w1, "b1": b1, "g1": ones(d0), "be1": zeros(d0),
        "w2": w2, "b2": b2, "g2": ones(d1), "be2": zeros(d1),
        "w3": w3, "b3": b3, "g3": ones(e), "be3": zeros(e),
        "wr": wr, "br": br,
        "wv": wv, "bv": bv,
        "wo": wo, "bo": bo,
        "gf": ones(e), "bf": zeros(e),
    }


if __name__ == "__main__":
    batch, input_dim, embedding_dim = 4, 32, 64   # num_heads=8 divides 64

    key = jax.random.PRNGKey(0)
    k_x, k_p = jax.random.split(key)
    x = jax.random.normal(k_x, (batch, input_dim), jnp.float32)
    params = init_params(k_p, input_dim, embedding_dim)

    # One-time, model-load-time weight preparation (fusion / padding / casts).
    prepared = prepare_projector_params(params)

    out = jax.block_until_ready(advanced_embedding_projector(x, prepared))
    assert out.shape == (batch, embedding_dim)

    ref = np.asarray(reference(x, params))
    # bf16 MXU operands + bf16 output store vs f32 reference -> loose tolerance
    # on tanh-range outputs.
    assert np.allclose(np.asarray(out), ref, atol=6e-2), float(
        np.max(np.abs(np.asarray(out) - ref)))
    print("KERNEL_OK")
</pallas_src>

<mosaic_0001>
module attributes {stable_mosaic.version = 11 : i64} {
  func.func @embedding_projector_kernel(%arg0: i32, %arg1: memref<16x32xf32, #tpu.memory_space<vmem>>, %arg2: memref<32x256xbf16, #tpu.memory_space<vmem>>, %arg3: memref<128x128xbf16, #tpu.memory_space<vmem>>, %arg4: memref<128x128xbf16, #tpu.memory_space<vmem>>, %arg5: memref<128x128xbf16, #tpu.memory_space<vmem>>, %arg6: memref<1x1664xf32, #tpu.memory_space<vmem>>, %arg7: memref<16x128xbf16, #tpu.memory_space<vmem>>) attributes {dimension_semantics = [#tpu.dimension_semantics<parallel>], iteration_bounds = array<i64: 1>, scalar_prefetch = 0 : i64, scratch_operands = 0 : i64, tpu.core_type = #tpu.core_type<tc>, window_params = [{transform_indices = @transform_0, window_bounds = array<i64: 16, 32>}, {pipeline_mode = #tpu.pipeline_mode<synchronous>, transform_indices = @transform_1, window_bounds = array<i64: 32, 256>}, {pipeline_mode = #tpu.pipeline_mode<synchronous>, transform_indices = @transform_2, window_bounds = array<i64: 128, 128>}, {pipeline_mode = #tpu.pipeline_mode<synchronous>, transform_indices = @transform_3, window_bounds = array<i64: 128, 128>}, {pipeline_mode = #tpu.pipeline_mode<synchronous>, transform_indices = @transform_4, window_bounds = array<i64: 128, 128>}, {pipeline_mode = #tpu.pipeline_mode<synchronous>, transform_indices = @transform_5, window_bounds = array<i64: 1, 1664>}, {transform_indices = @transform_6, window_bounds = array<i64: 16, 128>}]} {
    %c0 = arith.constant 0 : index
    %c0_0 = arith.constant 0 : index
    %0 = vector.load %arg6[%c0, %c0_0] : memref<1x1664xf32, #tpu.memory_space<vmem>>, vector<1x256xf32>
    %c0_1 = arith.constant 0 : index
    %c256 = arith.constant 256 : index
    %1 = vector.load %arg6[%c0_1, %c256] : memref<1x1664xf32, #tpu.memory_space<vmem>>, vector<1x128xf32>
    %c0_2 = arith.constant 0 : index
    %c384 = arith.constant 384 : index
    %2 = vector.load %arg6[%c0_2, %c384] : memref<1x1664xf32, #tpu.memory_space<vmem>>, vector<1x128xf32>
    %c0_3 = arith.constant 0 : index
    %c512 = arith.constant 512 : index
    %3 = vector.load %arg6[%c0_3, %c512] : memref<1x1664xf32, #tpu.memory_space<vmem>>, vector<1x128xf32>
    %c0_4 = arith.constant 0 : index
    %c640 = arith.constant 640 : index
    %4 = vector.load %arg6[%c0_4, %c640] : memref<1x1664xf32, #tpu.memory_space<vmem>>, vector<1x128xf32>
    %c0_5 = arith.constant 0 : index
    %c768 = arith.constant 768 : index
    %5 = vector.load %arg6[%c0_5, %c768] : memref<1x1664xf32, #tpu.memory_space<vmem>>, vector<1x128xf32>
    %c0_6 = arith.constant 0 : index
    %c896 = arith.constant 896 : index
    %6 = vector.load %arg6[%c0_6, %c896] : memref<1x1664xf32, #tpu.memory_space<vmem>>, vector<1x128xf32>
    %c0_7 = arith.constant 0 : index
    %c1024 = arith.constant 1024 : index
    %7 = vector.load %arg6[%c0_7, %c1024] : memref<1x1664xf32, #tpu.memory_space<vmem>>, vector<1x128xf32>
    %c0_8 = arith.constant 0 : index
    %c1152 = arith.constant 1152 : index
    %8 = vector.load %arg6[%c0_8, %c1152] : memref<1x1664xf32, #tpu.memory_space<vmem>>, vector<1x128xf32>
    %c0_9 = arith.constant 0 : index
    %c1280 = arith.constant 1280 : index
    %9 = vector.load %arg6[%c0_9, %c1280] : memref<1x1664xf32, #tpu.memory_space<vmem>>, vector<1x128xf32>
    %c0_10 = arith.constant 0 : index
    %c1408 = arith.constant 1408 : index
    %10 = vector.load %arg6[%c0_10, %c1408] : memref<1x1664xf32, #tpu.memory_space<vmem>>, vector<1x128xf32>
    %c0_11 = arith.constant 0 : index
    %c1536 = arith.constant 1536 : index
    %11 = vector.load %arg6[%c0_11, %c1536] : memref<1x1664xf32, #tpu.memory_space<vmem>>, vector<1x128xf32>
    %c0_12 = arith.constant 0 : index
    %c0_13 = arith.constant 0 : index
    %12 = vector.load %arg1[%c0_12, %c0_13] : memref<16x32xf32, #tpu.memory_space<vmem>>, vector<16x32xf32>
    %13 = arith.truncf %12 : vector<16x32xf32> to vector<16x32xbf16>
    %c0_14 = arith.constant 0 : index
    %c0_15 = arith.constant 0 : index
    %14 = vector.load %arg2[%c0_14, %c0_15] : memref<32x256xbf16, #tpu.memory_space<vmem>>, vector<32x256xbf16>
    %cst = arith.constant dense<0.000000e+00> : vector<16x256xf32>
    %15 = tpu.matmul %13, %14, %cst {dimension_numbers = #tpu.dot_dimension_numbers<[1], [0], [0], [1], [0, 0, 1, 1], [], []>} : vector<16x32xbf16>, vector<32x256xbf16>, vector<16x256xf32> -> vector<16x256xf32>
    %16 = vector.broadcast %0 : vector<1x256xf32> to vector<16x256xf32>
    %17 = arith.addf %15, %16 : vector<16x256xf32>
    %18 = vector.extract_strided_slice %17 {offsets = [0, 0], sizes = [16, 128], strides = [1, 1]} : vector<16x256xf32> to vector<16x128xf32>
    %19 = vector.extract_strided_slice %17 {offsets = [0, 128], sizes = [16, 128], strides = [1, 1]} : vector<16x256xf32> to vector<16x128xf32>
    %cst_16 = arith.constant dense<0.000000e+00> : vector<16xf32>
    %20 = vector.multi_reduction <add>, %18, %cst_16 [1] : vector<16x128xf32> to vector<16xf32>
    %21 = vector.shape_cast %20 : vector<16xf32> to vector<16x1xf32>
    %cst_17 = arith.constant 3.125000e-02 : f32
    %22 = vector.broadcast %cst_17 : f32 to vector<16x1xf32>
    %23 = arith.mulf %21, %22 : vector<16x1xf32>
    %24 = arith.mulf %18, %18 : vector<16x128xf32>
    %cst_18 = arith.constant dense<0.000000e+00> : vector<16xf32>
    %25 = vector.multi_reduction <add>, %24, %cst_18 [1] : vector<16x128xf32> to vector<16xf32>
    %26 = vector.shape_cast %25 : vector<16xf32> to vector<16x1xf32>
    %cst_19 = arith.constant 3.125000e-02 : f32
    %27 = vector.broadcast %cst_19 : f32 to vector<16x1xf32>
    %28 = arith.mulf %26, %27 : vector<16x1xf32>
    %29 = arith.mulf %23, %23 : vector<16x1xf32>
    %30 = arith.subf %28, %29 : vector<16x1xf32>
    %cst_20 = arith.constant 0.000000e+00 : f32
    %31 = vector.broadcast %cst_20 : f32 to vector<16x1xf32>
    %32 = arith.maximumf %30, %31 : vector<16x1xf32>
    %33 = vector.broadcast %23 : vector<16x1xf32> to vector<16x128xf32>
    %34 = arith.subf %18, %33 : vector<16x128xf32>
    %cst_21 = arith.constant 9.99999974E-6 : f32
    %35 = vector.broadcast %cst_21 : f32 to vector<16x1xf32>
    %36 = arith.addf %32, %35 : vector<16x1xf32>
    %37 = math.rsqrt %36 : vector<16x1xf32>
    %38 = vector.broadcast %37 : vector<16x1xf32> to vector<16x128xf32>
    %39 = arith.mulf %34, %38 : vector<16x128xf32>
    %40 = vector.broadcast %1 : vector<1x128xf32> to vector<16x128xf32>
    %41 = arith.mulf %39, %40 : vector<16x128xf32>
    %42 = vector.broadcast %2 : vector<1x128xf32> to vector<16x128xf32>
    %43 = arith.addf %41, %42 : vector<16x128xf32>
    %cst_22 = arith.constant 0.000000e+00 : f32
    %44 = vector.broadcast %cst_22 : f32 to vector<16x128xf32>
    %45 = arith.maximumf %43, %44 : vector<16x128xf32>
    %46 = arith.truncf %45 : vector<16x128xf32> to vector<16x128xbf16>
    %c0_23 = arith.constant 0 : index
    %c0_24 = arith.constant 0 : index
    %47 = vector.load %arg3[%c0_23, %c0_24] : memref<128x128xbf16, #tpu.memory_space<vmem>>, vector<128x128xbf16>
    %cst_25 = arith.constant dense<0.000000e+00> : vector<16x128xf32>
    %48 = tpu.matmul %46, %47, %cst_25 {dimension_numbers = #tpu.dot_dimension_numbers<[1], [0], [0], [1], [0, 0, 1, 1], [], []>} : vector<16x128xbf16>, vector<128x128xbf16>, vector<16x128xf32> -> vector<16x128xf32>
    %49 = vector.broadcast %3 : vector<1x128xf32> to vector<16x128xf32>
    %50 = arith.addf %48, %49 : vector<16x128xf32>
    %cst_26 = arith.constant dense<0.000000e+00> : vector<16xf32>
    %51 = vector.multi_reduction <add>, %50, %cst_26 [1] : vector<16x128xf32> to vector<16xf32>
    %52 = vector.shape_cast %51 : vector<16xf32> to vector<16x1xf32>
    %cst_27 = arith.constant 1.562500e-02 : f32
    %53 = vector.broadcast %cst_27 : f32 to vector<16x1xf32>
    %54 = arith.mulf %52, %53 : vector<16x1xf32>
    %55 = arith.mulf %50, %50 : vector<16x128xf32>
    %cst_28 = arith.constant dense<0.000000e+00> : vector<16xf32>
    %56 = vector.multi_reduction <add>, %55, %cst_28 [1] : vector<16x128xf32> to vector<16xf32>
    %57 = vector.shape_cast %56 : vector<16xf32> to vector<16x1xf32>
    %cst_29 = arith.constant 1.562500e-02 : f32
    %58 = vector.broadcast %cst_29 : f32 to vector<16x1xf32>
    %59 = arith.mulf %57, %58 : vector<16x1xf32>
    %60 = arith.mulf %54, %54 : vector<16x1xf32>
    %61 = arith.subf %59, %60 : vector<16x1xf32>
    %cst_30 = arith.constant 0.000000e+00 : f32
    %62 = vector.broadcast %cst_30 : f32 to vector<16x1xf32>
    %63 = arith.maximumf %61, %62 : vector<16x1xf32>
    %64 = vector.broadcast %54 : vector<16x1xf32> to vector<16x128xf32>
    %65 = arith.subf %50, %64 : vector<16x128xf32>
    %cst_31 = arith.constant 9.99999974E-6 : f32
    %66 = vector.broadcast %cst_31 : f32 to vector<16x1xf32>
    %67 = arith.addf %63, %66 : vector<16x1xf32>
    %68 = math.rsqrt %67 : vector<16x1xf32>
    %69 = vector.broadcast %68 : vector<16x1xf32> to vector<16x128xf32>
    %70 = arith.mulf %65, %69 : vector<16x128xf32>
    %71 = vector.broadcast %4 : vector<1x128xf32> to vector<16x128xf32>
    %72 = arith.mulf %70, %71 : vector<16x128xf32>
    %73 = vector.broadcast %5 : vector<1x128xf32> to vector<16x128xf32>
    %74 = arith.addf %72, %73 : vector<16x128xf32>
    %cst_32 = arith.constant 0.000000e+00 : f32
    %75 = vector.broadcast %cst_32 : f32 to vector<16x128xf32>
    %76 = arith.maximumf %74, %75 : vector<16x128xf32>
    %77 = arith.truncf %76 : vector<16x128xf32> to vector<16x128xbf16>
    %c0_33 = arith.constant 0 : index
    %c0_34 = arith.constant 0 : index
    %78 = vector.load %arg4[%c0_33, %c0_34] : memref<128x128xbf16, #tpu.memory_space<vmem>>, vector<128x128xbf16>
    %cst_35 = arith.constant dense<0.000000e+00> : vector<16x128xf32>
    %79 = tpu.matmul %77, %78, %cst_35 {dimension_numbers = #tpu.dot_dimension_numbers<[1], [0], [0], [1], [0, 0, 1, 1], [], []>} : vector<16x128xbf16>, vector<128x128xbf16>, vector<16x128xf32> -> vector<16x128xf32>
    %80 = vector.broadcast %6 : vector<1x128xf32> to vector<16x128xf32>
    %81 = arith.addf %79, %80 : vector<16x128xf32>
    %cst_36 = arith.constant dense<0.000000e+00> : vector<16xf32>
    %82 = vector.multi_reduction <add>, %81, %cst_36 [1] : vector<16x128xf32> to vector<16xf32>
    %83 = vector.shape_cast %82 : vector<16xf32> to vector<16x1xf32>
    %cst_37 = arith.constant 1.562500e-02 : f32
    %84 = vector.broadcast %cst_37 : f32 to vector<16x1xf32>
    %85 = arith.mulf %83, %84 : vector<16x1xf32>
    %86 = arith.mulf %81, %81 : vector<16x128xf32>
    %cst_38 = arith.constant dense<0.000000e+00> : vector<16xf32>
    %87 = vector.multi_reduction <add>, %86, %cst_38 [1] : vector<16x128xf32> to vector<16xf32>
    %88 = vector.shape_cast %87 : vector<16xf32> to vector<16x1xf32>
    %cst_39 = arith.constant 1.562500e-02 : f32
    %89 = vector.broadcast %cst_39 : f32 to vector<16x1xf32>
    %90 = arith.mulf %88, %89 : vector<16x1xf32>
    %91 = arith.mulf %85, %85 : vector<16x1xf32>
    %92 = arith.subf %90, %91 : vector<16x1xf32>
    %cst_40 = arith.constant 0.000000e+00 : f32
    %93 = vector.broadcast %cst_40 : f32 to vector<16x1xf32>
    %94 = arith.maximumf %92, %93 : vector<16x1xf32>
    %95 = vector.broadcast %85 : vector<16x1xf32> to vector<16x128xf32>
    %96 = arith.subf %81, %95 : vector<16x128xf32>
    %cst_41 = arith.constant 9.99999974E-6 : f32
    %97 = vector.broadcast %cst_41 : f32 to vector<16x1xf32>
    %98 = arith.addf %94, %97 : vector<16x1xf32>
    %99 = math.rsqrt %98 : vector<16x1xf32>
    %100 = vector.broadcast %99 : vector<16x1xf32> to vector<16x128xf32>
    %101 = arith.mulf %96, %100 : vector<16x128xf32>
    %102 = vector.broadcast %7 : vector<1x128xf32> to vector<16x128xf32>
    %103 = arith.mulf %101, %102 : vector<16x128xf32>
    %104 = vector.broadcast %8 : vector<1x128xf32> to vector<16x128xf32>
    %105 = arith.addf %103, %104 : vector<16x128xf32>
    %cst_42 = arith.constant 0.000000e+00 : f32
    %106 = vector.broadcast %cst_42 : f32 to vector<16x128xf32>
    %107 = arith.maximumf %105, %106 : vector<16x128xf32>
    %108 = arith.addf %107, %19 : vector<16x128xf32>
    %109 = arith.truncf %108 : vector<16x128xf32> to vector<16x128xbf16>
    %c0_43 = arith.constant 0 : index
    %c0_44 = arith.constant 0 : index
    %110 = vector.load %arg5[%c0_43, %c0_44] : memref<128x128xbf16, #tpu.memory_space<vmem>>, vector<128x128xbf16>
    %cst_45 = arith.constant dense<0.000000e+00> : vector<16x128xf32>
    %111 = tpu.matmul %109, %110, %cst_45 {dimension_numbers = #tpu.dot_dimension_numbers<[1], [0], [0], [1], [0, 0, 1, 1], [], []>} : vector<16x128xbf16>, vector<128x128xbf16>, vector<16x128xf32> -> vector<16x128xf32>
    %112 = vector.broadcast %9 : vector<1x128xf32> to vector<16x128xf32>
    %113 = arith.addf %111, %112 : vector<16x128xf32>
    %cst_46 = arith.constant dense<0.000000e+00> : vector<16xf32>
    %114 = vector.multi_reduction <add>, %113, %cst_46 [1] : vector<16x128xf32> to vector<16xf32>
    %115 = vector.shape_cast %114 : vector<16xf32> to vector<16x1xf32>
    %cst_47 = arith.constant 1.562500e-02 : f32
    %116 = vector.broadcast %cst_47 : f32 to vector<16x1xf32>
    %117 = arith.mulf %115, %116 : vector<16x1xf32>
    %118 = arith.mulf %113, %113 : vector<16x128xf32>
    %cst_48 = arith.constant dense<0.000000e+00> : vector<16xf32>
    %119 = vector.multi_reduction <add>, %118, %cst_48 [1] : vector<16x128xf32> to vector<16xf32>
    %120 = vector.shape_cast %119 : vector<16xf32> to vector<16x1xf32>
    %cst_49 = arith.constant 1.562500e-02 : f32
    %121 = vector.broadcast %cst_49 : f32 to vector<16x1xf32>
    %122 = arith.mulf %120, %121 : vector<16x1xf32>
    %123 = arith.mulf %117, %117 : vector<16x1xf32>
    %124 = arith.subf %122, %123 : vector<16x1xf32>
    %cst_50 = arith.constant 0.000000e+00 : f32
    %125 = vector.broadcast %cst_50 : f32 to vector<16x1xf32>
    %126 = arith.maximumf %124, %125 : vector<16x1xf32>
    %127 = vector.broadcast %117 : vector<16x1xf32> to vector<16x128xf32>
    %128 = arith.subf %113, %127 : vector<16x128xf32>
    %cst_51 = arith.constant 9.99999974E-6 : f32
    %129 = vector.broadcast %cst_51 : f32 to vector<16x1xf32>
    %130 = arith.addf %126, %129 : vector<16x1xf32>
    %131 = math.rsqrt %130 : vector<16x1xf32>
    %132 = vector.broadcast %131 : vector<16x1xf32> to vector<16x128xf32>
    %133 = arith.mulf %128, %132 : vector<16x128xf32>
    %134 = vector.broadcast %10 : vector<1x128xf32> to vector<16x128xf32>
    %135 = arith.mulf %133, %134 : vector<16x128xf32>
    %136 = vector.broadcast %11 : vector<1x128xf32> to vector<16x128xf32>
    %137 = arith.addf %135, %136 : vector<16x128xf32>
    %138 = math.tanh %137 : vector<16x128xf32>
    %139 = arith.truncf %138 : vector<16x128xf32> to vector<16x128xbf16>
    %c0_52 = arith.constant 0 : index
    %c0_53 = arith.constant 0 : index
    %140 = vector.load %arg7[%c0_52, %c0_53] : memref<16x128xbf16, #tpu.memory_space<vmem>>, vector<16x128xbf16>
    tpu.vector_store %arg7[%c0_52, %c0_53], %139 {strides = array<i32>} : memref<16x128xbf16, #tpu.memory_space<vmem>>, vector<16x128xbf16>,
    return
  }
  func.func @transform_0(%arg0: i32) -> (i32, i32) {
    %c0_i32 = arith.constant 0 : i32
    %c0_i32_0 = arith.constant 0 : i32
    return %arg0, %c0_i32 : i32, i32
  }
  func.func @transform_1(%arg0: i32) -> (i32, i32) {
    %c0_i32 = arith.constant 0 : i32
    %c0_i32_0 = arith.constant 0 : i32
    %c0_i32_1 = arith.constant 0 : i32
    return %c0_i32, %c0_i32_0 : i32, i32
  }
  func.func @transform_2(%arg0: i32) -> (i32, i32) {
    %c0_i32 = arith.constant 0 : i32
    %c0_i32_0 = arith.constant 0 : i32
    %c0_i32_1 = arith.constant 0 : i32
    return %c0_i32, %c0_i32_0 : i32, i32
  }
  func.func @transform_3(%arg0: i32) -> (i32, i32) {
    %c0_i32 = arith.constant 0 : i32
    %c0_i32_0 = arith.constant 0 : i32
    %c0_i32_1 = arith.constant 0 : i32
    return %c0_i32, %c0_i32_0 : i32, i32
  }
  func.func @transform_4(%arg0: i32) -> (i32, i32) {
    %c0_i32 = arith.constant 0 : i32
    %c0_i32_0 = arith.constant 0 : i32
    %c0_i32_1 = arith.constant 0 : i32
    return %c0_i32, %c0_i32_0 : i32, i32
  }
  func.func @transform_5(%arg0: i32) -> (i32, i32) {
    %c0_i32 = arith.constant 0 : i32
    %c0_i32_0 = arith.constant 0 : i32
    %c0_i32_1 = arith.constant 0 : i32
    return %c0_i32, %c0_i32_0 : i32, i32
  }
  func.func @transform_6(%arg0: i32) -> (i32, i32) {
    %c0_i32 = arith.constant 0 : i32
    %c0_i32_0 = arith.constant 0 : i32
    return %arg0, %c0_i32 : i32, i32
  }
}

</mosaic_0001>

<llo_original>
// kernel: tpu_custom_call.1
$region0: #{tpu_custom_call.1}
  #allocation0 [shape = 'u32[]', space=smem, size = 0x4, offset = 0x4, fixed_abs, tag = 'smem constant byte address 0x4 - core index']
  #allocation1 [shape = 'u32[144,128]{1,0:T(1,128)}', space=vmem, size = 0x12000, scoped, tag = 'internal scratch']
  %s0 = inlined_call_operand.hbm [shape: f32[16,32], index: 0, kind: input, shape index: {}]
  %s1 = inlined_call_operand.hbm [shape: bf16[32,256], index: 1, kind: input, shape index: {}]
  %s2 = inlined_call_operand.hbm [shape: bf16[128,128], index: 2, kind: input, shape index: {}]
  %s3 = inlined_call_operand.hbm [shape: bf16[128,128], index: 3, kind: input, shape index: {}]
  %s4 = inlined_call_operand.hbm [shape: bf16[128,128], index: 4, kind: input, shape index: {}]
  %s5 = inlined_call_operand.vmem [shape: f32[1,1664], index: 5, kind: input, shape index: {}]
  %s6 = inlined_call_operand.hbm [shape: bf16[16,128], index: 6, kind: output, shape index: {}]
  %s7 = sld [smem:[#allocation0]]
  $region54: #{tpu_custom_call.1} parent=0
    _
  %s9 = ssub.s32 1, %s7
  %s10 = scalar_select 0, %s9, %s7
  $region1: #{tpu_custom_call.1} parent=0
    #allocation2 [shape = 'u8[8192]{0}', space=vmem, size = 0x2000, scoped, tag = 'input window, operand 0, single buffered']
    #allocation3 [shape = 's32[1]{0}', space=sflag, size = 0x4, scoped, tag = 'scoped memory for tpu_custom_call.1']
    #allocation4 [shape = 's32[1]{0}', space=sflag, size = 0x4, scoped, tag = 'scoped memory for tpu_custom_call.1']
    #allocation5 [shape = 'u8[16384]{0}', space=vmem, size = 0x4000, scoped, tag = 'input window, operand 1, single buffered']
    #allocation6 [shape = 's32[1]{0}', space=sflag, size = 0x4, scoped, tag = 'scoped memory for tpu_custom_call.1']
    #allocation7 [shape = 'u8[32768]{0}', space=vmem, size = 0x8000, scoped, tag = 'input window, operand 2, single buffered']
    #allocation8 [shape = 'u8[32768]{0}', space=vmem, size = 0x8000, scoped, tag = 'input window, operand 3, single buffered']
    #allocation9 [shape = 's32[1]{0}', space=sflag, size = 0x4, scoped, tag = 'scoped memory for tpu_custom_call.1']
    #allocation10 [shape = 'u8[32768]{0}', space=vmem, size = 0x8000, scoped, tag = 'input window, operand 4, single buffered']
    #allocation11 [shape = 'u8[4096]{0}', space=vmem, size = 0x1000, scoped, tag = 'output window, operand 0, single buffered']
    %11 = vsyncpa [#allocation3], 0
    %12 = vsyncpa [#allocation6], 0
    %13 = vsyncpa [#allocation9], 0
    %14 = vsyncpa [#allocation4], 0
    // Predicated region
    $region2: #{tpu_custom_call.1} parent=1 // pred_check
      _
    $region3: #{tpu_custom_call.1} parent=1 // pred_check_branch
      %16 = sbr.rel (0) target = $region5
    $region4: #{tpu_custom_call.1} parent=1 // pred_region
      %s18 = ssub.s32 256, 256
      %19 = vsyncadd [#allocation3], %s18
      %s20 = sshll.u32 [#allocation2], 4
      %s21 = int_to_ptr.vmem [resolvable:$true] %s20
      %26 = dma.hbm_to_vmem [thread:$0]  %s0, 256, %s21, [#allocation3], 128, 128, 8
    $region5: #{tpu_custom_call.1} parent=1 // pred_fallthru
      _
    // Predicated region
    $region6: #{tpu_custom_call.1} parent=1 // pred_check
      _
    $region7: #{tpu_custom_call.1} parent=1 // pred_check_branch
      %28 = sbr.rel (0) target = $region9
    $region8: #{tpu_custom_call.1} parent=1 // pred_region
      %s30 = ssub.s32 512, 512
      %31 = vsyncadd [#allocation6], %s30
      %s32 = sshll.u32 [#allocation5], 4
      %s33 = int_to_ptr.vmem [resolvable:$true] %s32
      %38 = dma.hbm_to_vmem [thread:$0]  %s1, 512, %s33, [#allocation6], 128, 128, 8
    $region9: #{tpu_custom_call.1} parent=1 // pred_fallthru
      _
    // Predicated region
    $region10: #{tpu_custom_call.1} parent=1 // pred_check
      _
    $region11: #{tpu_custom_call.1} parent=1 // pred_check_branch
      %40 = sbr.rel (0) target = $region13
    $region12: #{tpu_custom_call.1} parent=1 // pred_region
      %s42 = ssub.s32 1024, 1024
      %43 = vsyncadd [#allocation6], %s42
      %s44 = sshll.u32 [#allocation7], 4
      %s45 = int_to_ptr.vmem [resolvable:$true] %s44
      %50 = dma.hbm_to_vmem [thread:$0]  %s2, 1024, %s45, [#allocation6], 64, 64, 4
    $region13: #{tpu_custom_call.1} parent=1 // pred_fallthru
      _
    // Predicated region
    $region14: #{tpu_custom_call.1} parent=1 // pred_check
      _
    $region15: #{tpu_custom_call.1} parent=1 // pred_check_branch
      %52 = sbr.rel (0) target = $region17
    $region16: #{tpu_custom_call.1} parent=1 // pred_region
      %s54 = ssub.s32 1024, 1024
      %55 = vsyncadd [#allocation9], %s54
      %s56 = sshll.u32 [#allocation8], 4
      %s57 = int_to_ptr.vmem [resolvable:$true] %s56
      %62 = dma.hbm_to_vmem [thread:$0]  %s3, 1024, %s57, [#allocation9], 64, 64, 4
    $region17: #{tpu_custom_call.1} parent=1 // pred_fallthru
      _
    // Predicated region
    $region18: #{tpu_custom_call.1} parent=1 // pred_check
      _
    $region19: #{tpu_custom_call.1} parent=1 // pred_check_branch
      %64 = sbr.rel (0) target = $region21
    $region20: #{tpu_custom_call.1} parent=1 // pred_region
      %s66 = ssub.s32 1024, 1024
      %67 = vsyncadd [#allocation9], %s66
      %s68 = sshll.u32 [#allocation10], 4
      %s69 = int_to_ptr.vmem [resolvable:$true] %s68
      %74 = dma.hbm_to_vmem [thread:$0]  %s4, 1024, %s69, [#allocation9], 64, 64, 4
    $region21: #{tpu_custom_call.1} parent=1 // pred_fallthru
      _
    // Predicated region
    $region22: #{tpu_custom_call.1} parent=1 // pred_check
      _
    $region23: #{tpu_custom_call.1} parent=1 // pred_check_branch
      %76 = sbr.rel (0) target = $region25
    $region24: #{tpu_custom_call.1} parent=1 // pred_region
      _
    $region25: #{tpu_custom_call.1} parent=1 // pred_fallthru
      _
    // Predicated region
    $region26: #{tpu_custom_call.1} parent=1 // pred_check
      _
    $region27: #{tpu_custom_call.1} parent=1 // pred_check_branch
      %78 = sbr.rel (0) target = $region29
    $region28: #{tpu_custom_call.1} parent=1 // pred_region
      %79 = dma.done [#allocation3], 256
    $region29: #{tpu_custom_call.1} parent=1 // pred_fallthru
      _
    // Predicated region
    $region30: #{tpu_custom_call.1} parent=1 // pred_check
      _
    $region31: #{tpu_custom_call.1} parent=1 // pred_check_branch
      %81 = sbr.rel (0) target = $region33
    $region32: #{tpu_custom_call.1} parent=1 // pred_region
      %82 = dma.done [#allocation6], 512
    $region33: #{tpu_custom_call.1} parent=1 // pred_fallthru
      _
    // Predicated region
    $region34: #{tpu_custom_call.1} parent=1 // pred_check
      _
    $region35: #{tpu_custom_call.1} parent=1 // pred_check_branch
      %84 = sbr.rel (0) target = $region37
    $region36: #{tpu_custom_call.1} parent=1 // pred_region
      %85 = dma.done [#allocation6], 1024
    $region37: #{tpu_custom_call.1} parent=1 // pred_fallthru
      _
    // Predicated region
    $region38: #{tpu_custom_call.1} parent=1 // pred_check
      _
    $region39: #{tpu_custom_call.1} parent=1 // pred_check_branch
      %87 = sbr.rel (0) target = $region41
    $region40: #{tpu_custom_call.1} parent=1 // pred_region
      %88 = dma.done [#allocation9], 1024
    $region41: #{tpu_custom_call.1} parent=1 // pred_fallthru
      _
    // Predicated region
    $region42: #{tpu_custom_call.1} parent=1 // pred_check
      _
    $region43: #{tpu_custom_call.1} parent=1 // pred_check_branch
      %90 = sbr.rel (0) target = $region45
    $region44: #{tpu_custom_call.1} parent=1 // pred_region
      %91 = dma.done [#allocation9], 1024
    $region45: #{tpu_custom_call.1} parent=1 // pred_fallthru
      _
    %v93 = vld [vmem:[%s5] sm:$0x3]
    %v94 = vld [vmem:[%s5 + $0x2] sm:$0x1]
    %v95 = vld [vmem:[%s5 + $0x3] sm:$0x1]
    %v96 = vld [vmem:[%s5 + $0x4] sm:$0x1]
    %v97 = vld [vmem:[%s5 + $0x5] sm:$0x1]
    %v98 = vld [vmem:[%s5 + $0x6] sm:$0x1]
    %v99 = vld [vmem:[%s5 + $0x7] sm:$0x1]
    %v100 = vld [vmem:[%s5 + $0x8] sm:$0x1]
    %v101 = vld [vmem:[%s5 + $0x9] sm:$0x1]
    %v102 = vld [vmem:[%s5 + $0xa] sm:$0x1]
    %v103 = vld [vmem:[%s5 + $0xb] sm:$0x1]
    %v104 = vld [vmem:[%s5 + $0xc] sm:$0x1]
    %v105 = vld [vmem:[#allocation2] sm:$0xff]
    %v106 = vld [vmem:[#allocation2 + $0x8] sm:$0xff]
    %v107 = vpack.c.bf16 %v106, %v105
    %v108 = vld [vmem:[#allocation5] sm:$0xff]
    %v109 = vld [vmem:[#allocation5 + $0x8] sm:$0xff]
    %v110 = vld [vmem:[#allocation5 + $0x10] sm:$0xff]
    %v111 = vld [vmem:[#allocation5 + $0x18] sm:$0xff]
    %v113 = vlaneseq
    %v114 = vshrl.u32 %v113, 7
    %v115 = vsub.s32 0, %v114
    %v116 = vrot.slane %v93, %v115
    %v117 = vlaneseq
    %v118 = vshrl.u32 %v117, 7
    %v119 = vsub.s32 1, %v118
    %v120 = vrot.slane %v93, %v119
    %v127 = vunpack.c.l.b16 %v108
    %v128 = vunpack.c.h.b16 %v108
    %v129 = vunpack.c.l.b16 %v109
    %v130 = vunpack.c.h.b16 %v109
    %v131 = vunpack.c.l.b16 %v110
    %v132 = vunpack.c.h.b16 %v110
    %v133 = vunpack.c.l.b16 %v111
    %v134 = vunpack.c.h.b16 %v111
    %v135 = vpack.c.b16 %v129, %v127
    %v136 = vpack.c.b16 %v130, %v128
    %v137 = vpack.c.b16 %v133, %v131
    %v138 = vpack.c.b16 %v134, %v132
    %vm143 = vcmask 261120
    %v145 = vsel %vm143, %v107, 0
    %147 = vmatprep.subr.bf16.mxu0 %v136
    %148 = vmatpush1.bf16.msra.mxu0 %v135
    %149 = vmatprep.subr.bf16.mxu0 %v138
    %150 = vmatpush1.bf16.msra.mxu0 %v137
    %151 = vmatprep.subr.bf16.mxu0 0
    %152 = vmatpush1.bf16.msra.mxu0 0
    %153 = vmatprep.subr.bf16.mxu0 0
    %154 = vmatpush1.bf16.msra.mxu0 0
    %155 = vmatprep.subr.bf16.mxu0 0
    %156 = vmatpush1.bf16.msra.mxu0 0
    %157 = vmatprep.subr.bf16.mxu0 0
    %158 = vmatpush1.bf16.msra.mxu0 0
    %159 = vmatprep.subr.bf16.mxu0 0
    %160 = vmatpush1.bf16.msra.mxu0 0
    %161 = vmatprep.subr.bf16.mxu0 0
    %162 = vmatpush1.bf16.msra.mxu0 0
    %163 = vmatprep.subr.bf16.mxu0 0
    %164 = vmatpush1.bf16.msra.mxu0 0
    %165 = vmatprep.subr.bf16.mxu0 0
    %166 = vmatpush1.bf16.msra.mxu0 0
    %167 = vmatprep.subr.bf16.mxu0 0
    %168 = vmatpush1.bf16.msra.mxu0 0
    %169 = vmatprep.subr.bf16.mxu0 0
    %170 = vmatpush1.bf16.msra.mxu0 0
    %171 = vmatprep.subr.bf16.mxu0 0
    %172 = vmatpush1.bf16.msra.mxu0 0
    %173 = vmatprep.subr.bf16.mxu0 0
    %174 = vmatpush1.bf16.msra.mxu0 0
    %175 = vmatprep.subr.bf16.mxu0 0
    %176 = vmatpush1.bf16.msra.mxu0 0
    %177 = vmatprep.subr.bf16.mxu0 0
    %178 = vmatpush1.bf16.msra.mxu0 0
    %179 = vmatprep.mubr.bf16.mxu0 0
    %180 = vmatmul.mubr.bf16.gmra.mrb[0].mxu0 %v145
    %v181 = vpop.f32.mrb[0].mxu0
    %v182 = vadd.f32 %v116, %v181
    %v183 = vpop.f32.mrb[0].mxu0
    %v184 = vadd.f32 %v120, %v183
    %v185 = vpop.f32.mrb[0].mxu0
    %v186 = vadd.f32 %v116, %v185
    %v187 = vpop.f32.mrb[0].mxu0
    %v188 = vadd.f32 %v120, %v187
    %189 = vdwg.mxu0
    %190 = vadd.xlane.f32.xlu0 %v182
    %v191 = vpop.xlane.xlu0 %190
    %192 = vadd.xlane.f32.xlu0 %v186
    %v193 = vpop.xlane.xlu0 %192
    %v194 = vmul.f32 %v191, 0.03125
    %v195 = vmul.f32 %v193, 0.03125
    %v196 = vmul.f32 %v182, %v182
    %v197 = vmul.f32 %v186, %v186
    %198 = vadd.xlane.f32.xlu0 %v196
    %v199 = vpop.xlane.xlu0 %198
    %200 = vadd.xlane.f32.xlu0 %v197
    %v201 = vpop.xlane.xlu0 %200
    %v202 = vmul.f32 %v199, 0.03125
    %v203 = vmul.f32 %v201, 0.03125
    %v204 = vmul.f32 %v194, %v194
    %v205 = vmul.f32 %v195, %v195
    %v206 = vsub.f32 %v202, %v204
    %v207 = vsub.f32 %v203, %v205
    %v208 = vmax.f32 %v206, 0.0
    %v209 = vmax.f32 %v207, 0.0
    %v210 = vsub.f32 %v182, %v194
    %v211 = vsub.f32 %v186, %v195
    %v212 = vadd.f32 %v208, 1e-05
    %v213 = vadd.f32 %v209, 1e-05
    %v214 = vrsqrt.pop %v212
    %v215 = vrsqrt.pop %v213
    %v216 = vmul.f32 %v210, %v214
    %v217 = vmul.f32 %v211, %v215
    %v219 = vlaneseq
    %v220 = vshrl.u32 %v219, 7
    %v221 = vsub.s32 0, %v220
    %v222 = vrot.slane %v94, %v221
    %v224 = vmul.f32 %v216, %v222
    %v225 = vmul.f32 %v217, %v222
    %v227 = vlaneseq
    %v228 = vshrl.u32 %v227, 7
    %v229 = vsub.s32 0, %v228
    %v230 = vrot.slane %v95, %v229
    %v232 = vadd.f32 %v224, %v230
    %v233 = vadd.f32 %v225, %v230
    %v234 = vmax.f32 %v232, 0.0
    %v235 = vmax.f32 %v233, 0.0
    %v236 = vpack.c.bf16 %v235, %v234
    %v237 = vld [vmem:[#allocation7] sm:$0xf]
    %v238 = vld [vmem:[#allocation7 + $0x4] sm:$0xf]
    %v239 = vld [vmem:[#allocation7 + $0x8] sm:$0xf]
    %v240 = vld [vmem:[#allocation7 + $0xc] sm:$0xf]
    %v241 = vld [vmem:[#allocation7 + $0x10] sm:$0xf]
    %v242 = vld [vmem:[#allocation7 + $0x14] sm:$0xf]
    %v243 = vld [vmem:[#allocation7 + $0x18] sm:$0xf]
    %v244 = vld [vmem:[#allocation7 + $0x1c] sm:$0xf]
    %v245 = vld [vmem:[#allocation7 + $0x20] sm:$0xf]
    %v246 = vld [vmem:[#allocation7 + $0x24] sm:$0xf]
    %v247 = vld [vmem:[#allocation7 + $0x28] sm:$0xf]
    %v248 = vld [vmem:[#allocation7 + $0x2c] sm:$0xf]
    %v249 = vld [vmem:[#allocation7 + $0x30] sm:$0xf]
    %v250 = vld [vmem:[#allocation7 + $0x34] sm:$0xf]
    %v251 = vld [vmem:[#allocation7 + $0x38] sm:$0xf]
    %v252 = vld [vmem:[#allocation7 + $0x3c] sm:$0xf]
    %v254 = vlaneseq
    %v255 = vshrl.u32 %v254, 7
    %v256 = vsub.s32 0, %v255
    %v257 = vrot.slane %v96, %v256
    %v275 = vunpack.c.l.b16 %v237
    %v276 = vunpack.c.l.b16 %v238
    %v277 = vunpack.c.l.b16 %v239
    %v278 = vunpack.c.l.b16 %v240
    %v279 = vunpack.c.l.b16 %v241
    %v280 = vunpack.c.l.b16 %v242
    %v281 = vunpack.c.l.b16 %v243
    %v282 = vunpack.c.l.b16 %v244
    %v283 = vunpack.c.l.b16 %v245
    %v284 = vunpack.c.l.b16 %v246
    %v285 = vunpack.c.l.b16 %v247
    %v286 = vunpack.c.l.b16 %v248
    %v287 = vunpack.c.l.b16 %v249
    %v288 = vunpack.c.l.b16 %v250
    %v289 = vunpack.c.l.b16 %v251
    %v290 = vunpack.c.l.b16 %v252
    %v291 = vpack.c.b16 %v276, %v275
    %v292 = vpack.c.b16 %v278, %v277
    %v293 = vpack.c.b16 %v280, %v279
    %v294 = vpack.c.b16 %v282, %v281
    %v295 = vpack.c.b16 %v284, %v283
    %v296 = vpack.c.b16 %v286, %v285
    %v297 = vpack.c.b16 %v288, %v287
    %v298 = vpack.c.b16 %v290, %v289
    %307 = vmatprep.subr.bf16.mxu0 0
    %308 = vmatpush1.bf16.msra.mxu0 %v291
    %309 = vmatprep.subr.bf16.mxu0 0
    %310 = vmatpush1.bf16.msra.mxu0 %v292
    %311 = vmatprep.subr.bf16.mxu0 0
    %312 = vmatpush1.bf16.msra.mxu0 %v293
    %313 = vmatprep.subr.bf16.mxu0 0
    %314 = vmatpush1.bf16.msra.mxu0 %v294
    %315 = vmatprep.subr.bf16.mxu0 0
    %316 = vmatpush1.bf16.msra.mxu0 %v295
    %317 = vmatprep.subr.bf16.mxu0 0
    %318 = vmatpush1.bf16.msra.mxu0 %v296
    %319 = vmatprep.subr.bf16.mxu0 0
    %320 = vmatpush1.bf16.msra.mxu0 %v297
    %321 = vmatprep.subr.bf16.mxu0 0
    %322 = vmatpush1.bf16.msra.mxu0 %v298
    %323 = vmatprep.subr.bf16.mxu0 0
    %324 = vmatpush1.bf16.msra.mxu0 0
    %325 = vmatprep.subr.bf16.mxu0 0
    %326 = vmatpush1.bf16.msra.mxu0 0
    %327 = vmatprep.subr.bf16.mxu0 0
    %328 = vmatpush1.bf16.msra.mxu0 0
    %329 = vmatprep.subr.bf16.mxu0 0
    %330 = vmatpush1.bf16.msra.mxu0 0
    %331 = vmatprep.subr.bf16.mxu0 0
    %332 = vmatpush1.bf16.msra.mxu0 0
    %333 = vmatprep.subr.bf16.mxu0 0
    %334 = vmatpush1.bf16.msra.mxu0 0
    %335 = vmatprep.subr.bf16.mxu0 0
    %336 = vmatpush1.bf16.msra.mxu0 0
    %337 = vmatprep.subr.bf16.mxu0 0
    %338 = vmatpush1.bf16.msra.mxu0 0
    %339 = vmatprep.mubr.bf16.mxu0 0
    %340 = vmatmul.mubr.bf16.gmra.mrb[0].mxu0 %v236
    %v341 = vpop.f32.mrb[0].mxu0
    %v342 = vadd.f32 %v257, %v341
    %v343 = vpop.f32.mrb[0].mxu0
    %v344 = vpop.f32.mrb[0].mxu0
    %v345 = vadd.f32 %v257, %v344
    %v346 = vpop.f32.mrb[0].mxu0
    %347 = vdwg.mxu0
    %348 = vadd.xlane.f32.xlu0 %v342
    %v349 = vpop.xlane.xlu0 %348
    %350 = vadd.xlane.f32.xlu0 %v345
    %v351 = vpop.xlane.xlu0 %350
    %v352 = vmul.f32 %v349, 0.015625
    %v353 = vmul.f32 %v351, 0.015625
    %v354 = vmul.f32 %v342, %v342
    %v355 = vmul.f32 %v345, %v345
    %356 = vadd.xlane.f32.xlu0 %v354
    %v357 = vpop.xlane.xlu0 %356
    %358 = vadd.xlane.f32.xlu0 %v355
    %v359 = vpop.xlane.xlu0 %358
    %v360 = vmul.f32 %v357, 0.015625
    %v361 = vmul.f32 %v359, 0.015625
    %v362 = vmul.f32 %v352, %v352
    %v363 = vmul.f32 %v353, %v353
    %v364 = vsub.f32 %v360, %v362
    %v365 = vsub.f32 %v361, %v363
    %v366 = vmax.f32 %v364, 0.0
    %v367 = vmax.f32 %v365, 0.0
    %v368 = vsub.f32 %v342, %v352
    %v369 = vsub.f32 %v345, %v353
    %v370 = vadd.f32 %v366, 1e-05
    %v371 = vadd.f32 %v367, 1e-05
    %v372 = vrsqrt.pop %v370
    %v373 = vrsqrt.pop %v371
    %v374 = vmul.f32 %v368, %v372
    %v375 = vmul.f32 %v369, %v373
    %v377 = vlaneseq
    %v378 = vshrl.u32 %v377, 7
    %v379 = vsub.s32 0, %v378
    %v380 = vrot.slane %v97, %v379
    %v382 = vmul.f32 %v374, %v380
    %v383 = vmul.f32 %v375, %v380
    %v385 = vlaneseq
    %v386 = vshrl.u32 %v385, 7
    %v387 = vsub.s32 0, %v386
    %v388 = vrot.slane %v98, %v387
    %v390 = vadd.f32 %v382, %v388
    %v391 = vadd.f32 %v383, %v388
    %v392 = vmax.f32 %v390, 0.0
    %v393 = vmax.f32 %v391, 0.0
    %v394 = vpack.c.bf16 %v393, %v392
    %v395 = vld [vmem:[#allocation8] sm:$0xf]
    %v396 = vld [vmem:[#allocation8 + $0x4] sm:$0xf]
    %v397 = vld [vmem:[#allocation8 + $0x8] sm:$0xf]
    %v398 = vld [vmem:[#allocation8 + $0xc] sm:$0xf]
    %v399 = vld [vmem:[#allocation8 + $0x10] sm:$0xf]
    %v400 = vld [vmem:[#allocation8 + $0x14] sm:$0xf]
    %v401 = vld [vmem:[#allocation8 + $0x18] sm:$0xf]
    %v402 = vld [vmem:[#allocation8 + $0x1c] sm:$0xf]
    %v403 = vld [vmem:[#allocation8 + $0x20] sm:$0xf]
    %v404 = vld [vmem:[#allocation8 + $0x24] sm:$0xf]
    %v405 = vld [vmem:[#allocation8 + $0x28] sm:$0xf]
    %v406 = vld [vmem:[#allocation8 + $0x2c] sm:$0xf]
    %v407 = vld [vmem:[#allocation8 + $0x30] sm:$0xf]
    %v408 = vld [vmem:[#allocation8 + $0x34] sm:$0xf]
    %v409 = vld [vmem:[#allocation8 + $0x38] sm:$0xf]
    %v410 = vld [vmem:[#allocation8 + $0x3c] sm:$0xf]
    %v412 = vlaneseq
    %v413 = vshrl.u32 %v412, 7
    %v414 = vsub.s32 0, %v413
    %v415 = vrot.slane %v99, %v414
    %v433 = vunpack.c.l.b16 %v395
    %v434 = vunpack.c.l.b16 %v396
    %v435 = vunpack.c.l.b16 %v397
    %v436 = vunpack.c.l.b16 %v398
    %v437 = vunpack.c.l.b16 %v399
    %v438 = vunpack.c.l.b16 %v400
    %v439 = vunpack.c.l.b16 %v401
    %v440 = vunpack.c.l.b16 %v402
    %v441 = vunpack.c.l.b16 %v403
    %v442 = vunpack.c.l.b16 %v404
    %v443 = vunpack.c.l.b16 %v405
    %v444 = vunpack.c.l.b16 %v406
    %v445 = vunpack.c.l.b16 %v407
    %v446 = vunpack.c.l.b16 %v408
    %v447 = vunpack.c.l.b16 %v409
    %v448 = vunpack.c.l.b16 %v410
    %v449 = vpack.c.b16 %v434, %v433
    %v450 = vpack.c.b16 %v436, %v435
    %v451 = vpack.c.b16 %v438, %v437
    %v452 = vpack.c.b16 %v440, %v439
    %v453 = vpack.c.b16 %v442, %v441
    %v454 = vpack.c.b16 %v444, %v443
    %v455 = vpack.c.b16 %v446, %v445
    %v456 = vpack.c.b16 %v448, %v447
    %465 = vmatprep.subr.bf16.mxu0 0
    %466 = vmatpush1.bf16.msra.mxu0 %v449
    %467 = vmatprep.subr.bf16.mxu0 0
    %468 = vmatpush1.bf16.msra.mxu0 %v450
    %469 = vmatprep.subr.bf16.mxu0 0
    %470 = vmatpush1.bf16.msra.mxu0 %v451
    %471 = vmatprep.subr.bf16.mxu0 0
    %472 = vmatpush1.bf16.msra.mxu0 %v452
    %473 = vmatprep.subr.bf16.mxu0 0
    %474 = vmatpush1.bf16.msra.mxu0 %v453
    %475 = vmatprep.subr.bf16.mxu0 0
    %476 = vmatpush1.bf16.msra.mxu0 %v454
    %477 = vmatprep.subr.bf16.mxu0 0
    %478 = vmatpush1.bf16.msra.mxu0 %v455
    %479 = vmatprep.subr.bf16.mxu0 0
    %480 = vmatpush1.bf16.msra.mxu0 %v456
    %481 = vmatprep.subr.bf16.mxu0 0
    %482 = vmatpush1.bf16.msra.mxu0 0
    %483 = vmatprep.subr.bf16.mxu0 0
    %484 = vmatpush1.bf16.msra.mxu0 0
    %485 = vmatprep.subr.bf16.mxu0 0
    %486 = vmatpush1.bf16.msra.mxu0 0
    %487 = vmatprep.subr.bf16.mxu0 0
    %488 = vmatpush1.bf16.msra.mxu0 0
    %489 = vmatprep.subr.bf16.mxu0 0
    %490 = vmatpush1.bf16.msra.mxu0 0
    %491 = vmatprep.subr.bf16.mxu0 0
    %492 = vmatpush1.bf16.msra.mxu0 0
    %493 = vmatprep.subr.bf16.mxu0 0
    %494 = vmatpush1.bf16.msra.mxu0 0
    %495 = vmatprep.subr.bf16.mxu0 0
    %496 = vmatpush1.bf16.msra.mxu0 0
    %497 = vmatprep.mubr.bf16.mxu0 0
    %498 = vmatmul.mubr.bf16.gmra.mrb[0].mxu0 %v394
    %v499 = vpop.f32.mrb[0].mxu0
    %v500 = vadd.f32 %v415, %v499
    %v501 = vpop.f32.mrb[0].mxu0
    %v502 = vpop.f32.mrb[0].mxu0
    %v503 = vadd.f32 %v415, %v502
    %v504 = vpop.f32.mrb[0].mxu0
    %505 = vdwg.mxu0
    %506 = vadd.xlane.f32.xlu0 %v500
    %v507 = vpop.xlane.xlu0 %506
    %508 = vadd.xlane.f32.xlu0 %v503
    %v509 = vpop.xlane.xlu0 %508
    %v510 = vmul.f32 %v507, 0.015625
    %v511 = vmul.f32 %v509, 0.015625
    %v512 = vmul.f32 %v500, %v500
    %v513 = vmul.f32 %v503, %v503
    %514 = vadd.xlane.f32.xlu0 %v512
    %v515 = vpop.xlane.xlu0 %514
    %516 = vadd.xlane.f32.xlu0 %v513
    %v517 = vpop.xlane.xlu0 %516
    %v518 = vmul.f32 %v515, 0.015625
    %v519 = vmul.f32 %v517, 0.015625
    %v520 = vmul.f32 %v510, %v510
    %v521 = vmul.f32 %v511, %v511
    %v522 = vsub.f32 %v518, %v520
    %v523 = vsub.f32 %v519, %v521
    %v524 = vmax.f32 %v522, 0.0
    %v525 = vmax.f32 %v523, 0.0
    %v526 = vsub.f32 %v500, %v510
    %v527 = vsub.f32 %v503, %v511
    %v528 = vadd.f32 %v524, 1e-05
    %v529 = vadd.f32 %v525, 1e-05
    %v530 = vrsqrt.pop %v528
    %v531 = vrsqrt.pop %v529
    %v532 = vmul.f32 %v526, %v530
    %v533 = vmul.f32 %v527, %v531
    %v535 = vlaneseq
    %v536 = vshrl.u32 %v535, 7
    %v537 = vsub.s32 0, %v536
    %v538 = vrot.slane %v100, %v537
    %v540 = vmul.f32 %v532, %v538
    %v541 = vmul.f32 %v533, %v538
    %v543 = vlaneseq
    %v544 = vshrl.u32 %v543, 7
    %v545 = vsub.s32 0, %v544
    %v546 = vrot.slane %v101, %v545
    %v548 = vadd.f32 %v540, %v546
    %v549 = vadd.f32 %v541, %v546
    %v550 = vmax.f32 %v548, 0.0
    %v551 = vmax.f32 %v549, 0.0
    %v552 = vadd.f32 %v550, %v184
    %v553 = vadd.f32 %v551, %v188
    %v554 = vpack.c.bf16 %v553, %v552
    %v555 = vld [vmem:[#allocation10] sm:$0xf]
    %v556 = vld [vmem:[#allocation10 + $0x4] sm:$0xf]
    %v557 = vld [vmem:[#allocation10 + $0x8] sm:$0xf]
    %v558 = vld [vmem:[#allocation10 + $0xc] sm:$0xf]
    %v559 = vld [vmem:[#allocation10 + $0x10] sm:$0xf]
    %v560 = vld [vmem:[#allocation10 + $0x14] sm:$0xf]
    %v561 = vld [vmem:[#allocation10 + $0x18] sm:$0xf]
    %v562 = vld [vmem:[#allocation10 + $0x1c] sm:$0xf]
    %v563 = vld [vmem:[#allocation10 + $0x20] sm:$0xf]
    %v564 = vld [vmem:[#allocation10 + $0x24] sm:$0xf]
    %v565 = vld [vmem:[#allocation10 + $0x28] sm:$0xf]
    %v566 = vld [vmem:[#allocation10 + $0x2c] sm:$0xf]
    %v567 = vld [vmem:[#allocation10 + $0x30] sm:$0xf]
    %v568 = vld [vmem:[#allocation10 + $0x34] sm:$0xf]
    %v569 = vld [vmem:[#allocation10 + $0x38] sm:$0xf]
    %v570 = vld [vmem:[#allocation10 + $0x3c] sm:$0xf]
    %v572 = vlaneseq
    %v573 = vshrl.u32 %v572, 7
    %v574 = vsub.s32 0, %v573
    %v575 = vrot.slane %v102, %v574
    %v593 = vunpack.c.l.b16 %v555
    %v594 = vunpack.c.l.b16 %v556
    %v595 = vunpack.c.l.b16 %v557
    %v596 = vunpack.c.l.b16 %v558
    %v597 = vunpack.c.l.b16 %v559
    %v598 = vunpack.c.l.b16 %v560
    %v599 = vunpack.c.l.b16 %v561
    %v600 = vunpack.c.l.b16 %v562
    %v601 = vunpack.c.l.b16 %v563
    %v602 = vunpack.c.l.b16 %v564
    %v603 = vunpack.c.l.b16 %v565
    %v604 = vunpack.c.l.b16 %v566
    %v605 = vunpack.c.l.b16 %v567
    %v606 = vunpack.c.l.b16 %v568
    %v607 = vunpack.c.l.b16 %v569
    %v608 = vunpack.c.l.b16 %v570
    %v609 = vpack.c.b16 %v594, %v593
    %v610 = vpack.c.b16 %v596, %v595
    %v611 = vpack.c.b16 %v598, %v597
    %v612 = vpack.c.b16 %v600, %v599
    %v613 = vpack.c.b16 %v602, %v601
    %v614 = vpack.c.b16 %v604, %v603
    %v615 = vpack.c.b16 %v606, %v605
    %v616 = vpack.c.b16 %v608, %v607
    %625 = vmatprep.subr.bf16.mxu0 0
    %626 = vmatpush1.bf16.msra.mxu0 %v609
    %627 = vmatprep.subr.bf16.mxu0 0
    %628 = vmatpush1.bf16.msra.mxu0 %v610
    %629 = vmatprep.subr.bf16.mxu0 0
    %630 = vmatpush1.bf16.msra.mxu0 %v611
    %631 = vmatprep.subr.bf16.mxu0 0
    %632 = vmatpush1.bf16.msra.mxu0 %v612
    %633 = vmatprep.subr.bf16.mxu0 0
    %634 = vmatpush1.bf16.msra.mxu0 %v613
    %635 = vmatprep.subr.bf16.mxu0 0
    %636 = vmatpush1.bf16.msra.mxu0 %v614
    %637 = vmatprep.subr.bf16.mxu0 0
    %638 = vmatpush1.bf16.msra.mxu0 %v615
    %639 = vmatprep.subr.bf16.mxu0 0
    %640 = vmatpush1.bf16.msra.mxu0 %v616
    %641 = vmatprep.subr.bf16.mxu0 0
    %642 = vmatpush1.bf16.msra.mxu0 0
    %643 = vmatprep.subr.bf16.mxu0 0
    %644 = vmatpush1.bf16.msra.mxu0 0
    %645 = vmatprep.subr.bf16.mxu0 0
    %646 = vmatpush1.bf16.msra.mxu0 0
    %647 = vmatprep.subr.bf16.mxu0 0
    %648 = vmatpush1.bf16.msra.mxu0 0
    %649 = vmatprep.subr.bf16.mxu0 0
    %650 = vmatpush1.bf16.msra.mxu0 0
    %651 = vmatprep.subr.bf16.mxu0 0
    %652 = vmatpush1.bf16.msra.mxu0 0
    %653 = vmatprep.subr.bf16.mxu0 0
    %654 = vmatpush1.bf16.msra.mxu0 0
    %655 = vmatprep.subr.bf16.mxu0 0
    %656 = vmatpush1.bf16.msra.mxu0 0
    %657 = vmatprep.mubr.bf16.mxu0 0
    %658 = vmatmul.mubr.bf16.gmra.mrb[0].mxu0 %v554
    %v659 = vpop.f32.mrb[0].mxu0
    %v660 = vadd.f32 %v575, %v659
    %v661 = vpop.f32.mrb[0].mxu0
    %v662 = vpop.f32.mrb[0].mxu0
    %v663 = vadd.f32 %v575, %v662
    %v664 = vpop.f32.mrb[0].mxu0
    %665 = vdwg.mxu0
    %666 = vadd.xlane.f32.xlu0 %v660
    %v667 = vpop.xlane.xlu0 %666
    %668 = vadd.xlane.f32.xlu0 %v663
    %v669 = vpop.xlane.xlu0 %668
    %v670 = vmul.f32 %v667, 0.015625
    %v671 = vmul.f32 %v669, 0.015625
    %v672 = vmul.f32 %v660, %v660
    %v673 = vmul.f32 %v663, %v663
    %674 = vadd.xlane.f32.xlu0 %v672
    %v675 = vpop.xlane.xlu0 %674
    %676 = vadd.xlane.f32.xlu0 %v673
    %v677 = vpop.xlane.xlu0 %676
    %v678 = vmul.f32 %v675, 0.015625
    %v679 = vmul.f32 %v677, 0.015625
    %v680 = vmul.f32 %v670, %v670
    %v681 = vmul.f32 %v671, %v671
    %v682 = vsub.f32 %v678, %v680
    %v683 = vsub.f32 %v679, %v681
    %v684 = vmax.f32 %v682, 0.0
    %v685 = vmax.f32 %v683, 0.0
    %v686 = vsub.f32 %v660, %v670
    %v687 = vsub.f32 %v663, %v671
    %v688 = vadd.f32 %v684, 1e-05
    %v689 = vadd.f32 %v685, 1e-05
    %v690 = vrsqrt.pop %v688
    %v691 = vrsqrt.pop %v689
    %v692 = vmul.f32 %v686, %v690
    %v693 = vmul.f32 %v687, %v691
    %v695 = vlaneseq
    %v696 = vshrl.u32 %v695, 7
    %v697 = vsub.s32 0, %v696
    %v698 = vrot.slane %v103, %v697
    %v700 = vmul.f32 %v692, %v698
    %v701 = vmul.f32 %v693, %v698
    %v703 = vlaneseq
    %v704 = vshrl.u32 %v703, 7
    %v705 = vsub.s32 0, %v704
    %v706 = vrot.slane %v104, %v705
    %v708 = vadd.f32 %v700, %v706
    %v709 = vadd.f32 %v701, %v706
    %v710 = vtanh.pop %v708
    %v711 = vtanh.pop %v709
    %v712 = vpack.c.bf16 %v711, %v710
    %v714 = vunpack.c.l.b16 %v712
    %v715 = vunpack.c.h.b16 %v712
    %v716 = vpack.c.b16 %v714, %v714
    %v717 = vpack.c.b16 %v715, %v715
    %720 = vst [vmem:[#allocation11] sm:$0xf] %v716
    %721 = vst [vmem:[#allocation11 + $0x4] sm:$0xf] %v717
    // Predicated region
    $region46: #{tpu_custom_call.1} parent=1 // pred_check
      _
    $region47: #{tpu_custom_call.1} parent=1 // pred_check_branch
      %723 = sbr.rel (0) target = $region49
    $region48: #{tpu_custom_call.1} parent=1 // pred_region
      %s725 = ssub.s32 128, 128
      %726 = vsyncadd [#allocation4], %s725
      %s727 = sshll.u32 [#allocation11], 4
      %s728 = int_to_ptr.vmem [resolvable:$true] %s727
      %733 = dma.vmem_to_hbm [thread:$0]  %s728, 128, %s6, [#allocation4], 64, 64, 4
    $region49: #{tpu_custom_call.1} parent=1 // pred_fallthru
      _
    // Predicated region
    $region50: #{tpu_custom_call.1} parent=1 // pred_check
      _
    $region51: #{tpu_custom_call.1} parent=1 // pred_check_branch
      %735 = sbr.rel (0) target = $region53
    $region52: #{tpu_custom_call.1} parent=1 // pred_region
      %736 = dma.done [#allocation4], 128
    $region53: #{tpu_custom_call.1} parent=1 // pred_fallthru
      _
    %737 = vsyncpa [#allocation3], 1
    %738 = vsyncpa [#allocation6], 1
    %739 = vsyncpa [#allocation9], 1
    %740 = vsyncpa [#allocation4], 1

</llo_original>
